<compile_context>
chip_gen: v7x
topology: tpu7x:2x2x1
jax: 0.10.0
libtpu: 0.0.40
codegen_flags: <defaults>
</compile_context>

<pallas_src>
import jax
import jax.numpy as jnp
from jax.experimental import pallas as pl
from jax.experimental.pallas import tpu as pltpu


# ----------------------------------------------------------------------------
# Fused whole-tree kernel.
#
# State-table row layout (h_tab / c_tab, shape (num_nodes + 2, 1, H)):
#   row 0     : zero state (used as "prev" by the first child of every internal
#               node, and as the "child" row of leaves -> zero contribution)
#   row 1     : external (prev_h, prev_c) passed to the root
#   row k + 2 : state of the k-th node in the post-order schedule
#
# Per grid step n (one tree node):
#   prev_h, prev_c = table[prev_row[n]]
#   child_h        = h_table[child_row[n]]           (row 0 for leaves)
#   hx   = child_h @ Wc + prev_h @ Wp + pre[n]
#   pre  = (leaf ? embeds[word] @ Wx + bx : b_child) + bp   (built once per tree
#          on the XLA side, streamed per node)
#   i|o|f = sigmoid(hx[:, :3H]),  u = tanh(hx[:, 3H:])
#   cell = i*u + f*prev_c ;  hidden = o*tanh(cell)
#   table[n + 2] = (hidden, cell)
# ----------------------------------------------------------------------------
def _tree_lstm_kernel(prev_row_ref, child_row_ref,              # scalar prefetch (SMEM)
                      pre_ref, wc_ref, wp_ref, ph_ref, pc_ref,  # inputs (VMEM)
                      h_tab_ref, c_tab_ref):                    # outputs (VMEM-resident)
    n = pl.program_id(0)
    H = ph_ref.shape[-1]

    # First grid step: seed the zero row and the external (root) prev state.
    @pl.when(n == 0)
    def _():
        zero = jnp.zeros((1, H), jnp.float32)
        h_tab_ref[0] = zero
        c_tab_ref[0] = zero
        h_tab_ref[1] = ph_ref[...]
        c_tab_ref[1] = pc_ref[...]

    prev_row = prev_row_ref[n]
    child_row = child_row_ref[n]

    prev_h = h_tab_ref[prev_row]       # (1, H)
    prev_c = c_tab_ref[prev_row]       # (1, H)
    child_h = h_tab_ref[child_row]     # (1, H); zeros for leaves

    hx = (jnp.dot(child_h, wc_ref[...], preferred_element_type=jnp.float32)
          + jnp.dot(prev_h, wp_ref[...], preferred_element_type=jnp.float32)
          + pre_ref[0])                # (1, 4H)

    g = jax.nn.sigmoid(hx[:, :3 * H])  # one wide EUP push for i|o|f
    u = jnp.tanh(hx[:, 3 * H:])        # one EUP push for u
    i = g[:, :H]
    o = g[:, H:2 * H]
    f = g[:, 2 * H:3 * H]

    cell = i * u + f * prev_c
    hidden = o * jnp.tanh(cell)

    h_tab_ref[n + 2] = hidden
    c_tab_ref[n + 2] = cell


@jax.jit
def tree_forward_fused(prev_row, child_row, is_leaf, word_idx,
                       embeds, wx, bx, wh, bh, wp, bp, prev_h, prev_c):
    """Run the whole flattened tree in one pallas_call.

    Returns (h_all, c_all) of shape (num_nodes + 2, H); rows 2.. are the
    per-node states in schedule order.
    """
    n_nodes = prev_row.shape[0]
    input_size = embeds.shape[-1]
    hidden_size = prev_h.shape[-1]
    H4 = 4 * hidden_size

    # Module semantics: internal nodes use encode_inputx when hidden==input,
    # otherwise encode_inputh.  (Static under jit — depends only on shapes.)
    if hidden_size == input_size:
        w_child, b_child = wx, bx
    else:
        w_child, b_child = wh, bh

    # Hoist the leaf-embedding matmul + all biases out of the per-node path:
    # one batched matmul per tree, streamed into the kernel per node.
    leaf_x = jnp.take(embeds, word_idx, axis=0)                    # (N, Din)
    pre_leaf = leaf_x @ wx + bx + bp                               # (N, 4H)
    pre_int = jnp.broadcast_to(b_child + bp, (n_nodes, H4))        # (N, 4H)
    pre = jnp.where(is_leaf[:, None] != 0, pre_leaf, pre_int)
    pre = pre.reshape(n_nodes, 1, H4)

    n_rows = n_nodes + 2
    grid_spec = pltpu.PrefetchScalarGridSpec(
        num_scalar_prefetch=2,
        grid=(n_nodes,),
        in_specs=[
            pl.BlockSpec((1, 1, H4), lambda n, *_: (n, 0, 0)),            # pre (streamed)
            pl.BlockSpec((hidden_size, H4), lambda n, *_: (0, 0)),        # Wc (resident)
            pl.BlockSpec((hidden_size, H4), lambda n, *_: (0, 0)),        # Wp (resident)
            pl.BlockSpec((1, hidden_size), lambda n, *_: (0, 0)),         # root prev_h
            pl.BlockSpec((1, hidden_size), lambda n, *_: (0, 0)),         # root prev_c
        ],
        out_specs=(
            pl.BlockSpec((n_rows, 1, hidden_size), lambda n, *_: (0, 0, 0)),  # h table
            pl.BlockSpec((n_rows, 1, hidden_size), lambda n, *_: (0, 0, 0)),  # c table
        ),
    )
    cost = pl.CostEstimate(
        flops=int(n_nodes * 2 * 2 * hidden_size * H4),
        transcendentals=int(n_nodes * 5 * hidden_size),
        bytes_accessed=int(4 * (2 * hidden_size * H4 + n_nodes * H4
                                + 2 * n_rows * hidden_size + 2 * hidden_size)),
    )

    h_tab, c_tab = pl.pallas_call(
        _tree_lstm_kernel,
        grid_spec=grid_spec,
        out_shape=(jax.ShapeDtypeStruct((n_rows, 1, hidden_size), jnp.float32),
                   jax.ShapeDtypeStruct((n_rows, 1, hidden_size), jnp.float32)),
        compiler_params=pltpu.CompilerParams(dimension_semantics=("arbitrary",)),
        cost_estimate=cost,
    )(prev_row, child_row, pre, w_child, wp, prev_h, prev_c)

    return h_tab[:, 0, :], c_tab[:, 0, :]


# ----------------------------------------------------------------------------
# Parameters (deterministic init, mirroring the PyTorch module's __init__)
# ----------------------------------------------------------------------------
def init_params(key, input_size, hidden_size, vocab_size, word_scale=0.05):
    ks = jax.random.split(key, 7)

    def linear(kw, kb, in_f, out_f):
        bound = 1.0 / jnp.sqrt(in_f)
        # stored pre-transposed: (in_f, out_f) so the kernel does x @ W + b
        w = jax.random.uniform(kw, (in_f, out_f), jnp.float32, -bound, bound)
        b = jax.random.uniform(kb, (1, out_f), jnp.float32, -bound, bound)
        return w, b

    embeds = jax.random.uniform(ks[0], (vocab_size, input_size), jnp.float32,
                                -word_scale, word_scale)
    wx, bx = linear(ks[1], ks[2], input_size, 4 * hidden_size)    # encode_inputx
    wh, bh = linear(ks[3], ks[4], hidden_size, 4 * hidden_size)   # encode_inputh
    wp, bp = linear(ks[5], ks[6], hidden_size, 4 * hidden_size)   # encode_prevh
    return dict(embeds=embeds, wx=wx, bx=bx, wh=wh, bh=bh, wp=wp, bp=bp)


# ----------------------------------------------------------------------------
# Tree structure, Python-side flattening, and the module wrapper
# ----------------------------------------------------------------------------
class Tree:
    def __init__(self, children=None, word=None):
        self.children = children if children is not None else []
        self.word = word
        self.state = None
        self.zero_state = None

    def getType(self):
        return len(self.children) != 0


def flatten_tree(tree):
    """Post-order schedule.  State-table rows: 0 = zeros, 1 = external prev,
    node k -> row k+2.  Returns (prev_rows, child_rows, is_leaf, words)."""
    prev_rows, child_rows, is_leaf, words = [], [], [], []

    def visit(node, prev_row):
        assert len(node.children) != 0 or node.word is not None
        assert not (len(node.children) != 0 and node.word is not None)
        if node.getType():                 # internal: children first, sibling-chained
            chain = 0                      # first child starts from the zero row
            for ch in node.children:
                chain = visit(ch, chain)
            idx = len(prev_rows)
            prev_rows.append(prev_row)
            child_rows.append(chain)       # last child's row
            is_leaf.append(0)
            words.append(0)
        else:
            idx = len(prev_rows)
            prev_rows.append(prev_row)
            child_rows.append(0)           # zero row -> zero child contribution
            is_leaf.append(1)
            words.append(int(node.word))
        node._order = idx
        return idx + 2

    visit(tree, 1)                         # root's prev state is the external one
    return prev_rows, child_rows, is_leaf, words


class TreeNodeJAX:
    """JAX/Pallas port of the PyTorch TreeNode module (forward pass)."""

    def __init__(self, params, input_size, hidden_size):
        self.p = params
        self.input_size = input_size
        self.hidden_size = hidden_size

    def init_state(self):
        z = jnp.zeros((1, self.hidden_size), jnp.float32)
        return (z, z)

    def forward(self, tree, prev_h, prev_c):
        p = self.p
        prev_rows, child_rows, is_leaf, words = flatten_tree(tree)
        h_all, c_all = tree_forward_fused(
            jnp.asarray(prev_rows, jnp.int32), jnp.asarray(child_rows, jnp.int32),
            jnp.asarray(is_leaf, jnp.int32), jnp.asarray(words, jnp.int32),
            p["embeds"], p["wx"], p["bx"], p["wh"], p["bh"], p["wp"], p["bp"],
            prev_h, prev_c)

        # Distribute per-node states back onto the tree (mirrors tree.state /
        # tree.zero_state attributes of the torch module).
        def assign(node):
            if node.getType():
                node.zero_state = self.init_state()
                for ch in node.children:
                    assign(ch)
            r = node._order + 2
            node.state = (h_all[r:r + 1, :], c_all[r:r + 1, :])

        assign(tree)
        return tree.state


# ----------------------------------------------------------------------------
# Pure-JAX recursive reference (mirrors the PyTorch forward exactly)
# ----------------------------------------------------------------------------
def ref_forward(params, input_size, hidden_size, tree, prev_h, prev_c):
    p = params

    def cell_update(hx, pc):
        H = hidden_size
        i, o, f, u = hx[:, :H], hx[:, H:2 * H], hx[:, 2 * H:3 * H], hx[:, 3 * H:]
        i, o, f, u = (jax.nn.sigmoid(i), jax.nn.sigmoid(o),
                      jax.nn.sigmoid(f), jnp.tanh(u))
        c = i * u + f * pc
        h = o * jnp.tanh(c)
        return h, c

    def rec(node, ph, pc):
        if node.getType():
            zh = jnp.zeros((1, hidden_size), jnp.float32)
            st = rec(node.children[0], zh, zh)
            for idx in range(1, len(node.children)):
                st = rec(node.children[idx], *st)
            prev_ch = st[0]
            if hidden_size == input_size:
                hx = prev_ch @ p["wx"] + p["bx"] + ph @ p["wp"] + p["bp"]
            else:
                hx = prev_ch @ p["wh"] + p["bh"] + ph @ p["wp"] + p["bp"]
        else:
            x = p["embeds"][jnp.array([node.word], jnp.int32)]
            hx = x @ p["wx"] + p["bx"] + ph @ p["wp"] + p["bp"]
        h, c = cell_update(hx, pc)
        node.state = (h, c)
        return node.state

    return rec(tree, prev_h, prev_c)


def _make_demo_tree():
    # root( leaf(3), internal(leaf(5), leaf(7)), leaf(11) )
    return Tree(children=[
        Tree(word=3),
        Tree(children=[Tree(word=5), Tree(word=7)]),
        Tree(word=11),
    ])


if __name__ == "__main__":
    # --- config 1: hidden != input  (internal nodes use encode_inputh) -------
    input_size, hidden_size, output_size, vocab_size = 48, 32, 32, 50
    params = init_params(jax.random.PRNGKey(0), input_size, hidden_size, vocab_size)
    model = TreeNodeJAX(params, input_size, hidden_size)

    tree = _make_demo_tree()
    prev_h = jnp.zeros((1, hidden_size), jnp.float32)
    prev_c = jnp.zeros((1, hidden_size), jnp.float32)

    hidden, cell = model.forward(tree, prev_h, prev_c)
    hidden = jax.block_until_ready(hidden)
    cell = jax.block_until_ready(cell)
    assert hidden.shape == (1, hidden_size) and cell.shape == (1, hidden_size)

    ref_tree = _make_demo_tree()
    h_ref, c_ref = ref_forward(params, input_size, hidden_size, ref_tree,
                               prev_h, prev_c)
    assert bool(jnp.allclose(hidden, h_ref, atol=1e-4, rtol=1e-4))
    assert bool(jnp.allclose(cell, c_ref, atol=1e-4, rtol=1e-4))
    # also check an intermediate (internal) node's state
    assert bool(jnp.allclose(tree.children[1].state[0],
                             ref_tree.children[1].state[0], atol=1e-4, rtol=1e-4))
    assert bool(jnp.allclose(tree.children[1].state[1],
                             ref_tree.children[1].state[1], atol=1e-4, rtol=1e-4))

    # --- config 2: hidden == input  (internal nodes use encode_inputx) -------
    params2 = init_params(jax.random.PRNGKey(1), 32, 32, vocab_size)
    model2 = TreeNodeJAX(params2, 32, 32)
    tree2 = _make_demo_tree()
    ph2 = jnp.zeros((1, 32), jnp.float32)
    h2, c2 = model2.forward(tree2, ph2, ph2)
    h2 = jax.block_until_ready(h2)
    ref_tree2 = _make_demo_tree()
    h2_ref, c2_ref = ref_forward(params2, 32, 32, ref_tree2, ph2, ph2)
    assert bool(jnp.allclose(h2, h2_ref, atol=1e-4, rtol=1e-4))
    assert bool(jnp.allclose(c2, c2_ref, atol=1e-4, rtol=1e-4))

    print("KERNEL_OK")
</pallas_src>

<mosaic_0001>
module attributes {stable_mosaic.version = 11 : i64} {
  func.func @_tree_lstm_kernel(%arg0: i32, %arg1: memref<6xi32, #tpu.memory_space<smem>>, %arg2: memref<6xi32, #tpu.memory_space<smem>>, %arg3: memref<1x1x128xf32, #tpu.memory_space<vmem>>, %arg4: memref<32x128xf32, #tpu.memory_space<vmem>>, %arg5: memref<32x128xf32, #tpu.memory_space<vmem>>, %arg6: memref<1x32xf32, #tpu.memory_space<vmem>>, %arg7: memref<1x32xf32, #tpu.memory_space<vmem>>, %arg8: memref<8x1x32xf32, #tpu.memory_space<vmem>>, %arg9: memref<8x1x32xf32, #tpu.memory_space<vmem>>) attributes {dimension_semantics = [#tpu.dimension_semantics<arbitrary>], iteration_bounds = array<i64: 6>, scalar_prefetch = 2 : i64, scratch_operands = 0 : i64, tpu.core_type = #tpu.core_type<tc>, window_params = [{transform_indices = @transform_0, window_bounds = array<i64: 1, 1, 128>}, {pipeline_mode = #tpu.pipeline_mode<synchronous>, transform_indices = @transform_1, window_bounds = array<i64: 32, 128>}, {pipeline_mode = #tpu.pipeline_mode<synchronous>, transform_indices = @transform_2, window_bounds = array<i64: 32, 128>}, {pipeline_mode = #tpu.pipeline_mode<synchronous>, transform_indices = @transform_3, window_bounds = array<i64: 1, 32>}, {pipeline_mode = #tpu.pipeline_mode<synchronous>, transform_indices = @transform_4, window_bounds = array<i64: 1, 32>}, {pipeline_mode = #tpu.pipeline_mode<synchronous>, transform_indices = @transform_5, window_bounds = array<i64: 8, 1, 32>}, {pipeline_mode = #tpu.pipeline_mode<synchronous>, transform_indices = @transform_6, window_bounds = array<i64: 8, 1, 32>}]} {
    %c0_i32 = arith.constant 0 : i32
    %0 = arith.cmpi eq, %arg0, %c0_i32 : i32
    %1 = arith.extui %0 : i1 to i32
    %c0_i32_0 = arith.constant 0 : i32
    %2 = arith.cmpi ne, %1, %c0_i32_0 : i32
    scf.if %2 {
      %cst_20 = arith.constant 0.000000e+00 : f32
      %50 = vector.broadcast %cst_20 : f32 to vector<1x32xf32>
      %c0_21 = arith.constant 0 : index
      %c0_22 = arith.constant 0 : index
      %c0_23 = arith.constant 0 : index
      %51 = vector.load %arg8[%c0_21, %c0_22, %c0_23] : memref<8x1x32xf32, #tpu.memory_space<vmem>>, vector<1x1x32xf32>
      %52 = vector.shape_cast %51 : vector<1x1x32xf32> to vector<1x32xf32>
      %53 = vector.shape_cast %50 : vector<1x32xf32> to vector<1x1x32xf32>
      tpu.vector_store %arg8[%c0_21, %c0_22, %c0_23], %53 {strides = array<i32>} : memref<8x1x32xf32, #tpu.memory_space<vmem>>, vector<1x1x32xf32>,
      %c0_24 = arith.constant 0 : index
      %c0_25 = arith.constant 0 : index
      %c0_26 = arith.constant 0 : index
      %54 = vector.load %arg9[%c0_24, %c0_25, %c0_26] : memref<8x1x32xf32, #tpu.memory_space<vmem>>, vector<1x1x32xf32>
      %55 = vector.shape_cast %54 : vector<1x1x32xf32> to vector<1x32xf32>
      %56 = vector.shape_cast %50 : vector<1x32xf32> to vector<1x1x32xf32>
      tpu.vector_store %arg9[%c0_24, %c0_25, %c0_26], %56 {strides = array<i32>} : memref<8x1x32xf32, #tpu.memory_space<vmem>>, vector<1x1x32xf32>,
      %c0_27 = arith.constant 0 : index
      %c0_28 = arith.constant 0 : index
      %57 = vector.load %arg6[%c0_27, %c0_28] : memref<1x32xf32, #tpu.memory_space<vmem>>, vector<1x32xf32>
      %c1 = arith.constant 1 : index
      %c0_29 = arith.constant 0 : index
      %c0_30 = arith.constant 0 : index
      %58 = vector.load %arg8[%c1, %c0_29, %c0_30] : memref<8x1x32xf32, #tpu.memory_space<vmem>>, vector<1x1x32xf32>
      %59 = vector.shape_cast %58 : vector<1x1x32xf32> to vector<1x32xf32>
      %60 = vector.shape_cast %57 : vector<1x32xf32> to vector<1x1x32xf32>
      tpu.vector_store %arg8[%c1, %c0_29, %c0_30], %60 {strides = array<i32>} : memref<8x1x32xf32, #tpu.memory_space<vmem>>, vector<1x1x32xf32>,
      %c0_31 = arith.constant 0 : index
      %c0_32 = arith.constant 0 : index
      %61 = vector.load %arg7[%c0_31, %c0_32] : memref<1x32xf32, #tpu.memory_space<vmem>>, vector<1x32xf32>
      %c1_33 = arith.constant 1 : index
      %c0_34 = arith.constant 0 : index
      %c0_35 = arith.constant 0 : index
      %62 = vector.load %arg9[%c1_33, %c0_34, %c0_35] : memref<8x1x32xf32, #tpu.memory_space<vmem>>, vector<1x1x32xf32>
      %63 = vector.shape_cast %62 : vector<1x1x32xf32> to vector<1x32xf32>
      %64 = vector.shape_cast %61 : vector<1x32xf32> to vector<1x1x32xf32>
      tpu.vector_store %arg9[%c1_33, %c0_34, %c0_35], %64 {strides = array<i32>} : memref<8x1x32xf32, #tpu.memory_space<vmem>>, vector<1x1x32xf32>,
    } else {
    }
    %3 = arith.index_cast %arg0 : i32 to index
    %4 = memref.load %arg1[%3] : memref<6xi32, #tpu.memory_space<smem>>
    %5 = arith.index_cast %arg0 : i32 to index
    %6 = memref.load %arg2[%5] : memref<6xi32, #tpu.memory_space<smem>>
    %7 = arith.index_cast %4 : i32 to index
    %c0 = arith.constant 0 : index
    %c0_1 = arith.constant 0 : index
    %8 = vector.load %arg8[%7, %c0, %c0_1] : memref<8x1x32xf32, #tpu.memory_space<vmem>>, vector<1x1x32xf32>
    %9 = vector.shape_cast %8 : vector<1x1x32xf32> to vector<1x32xf32>
    %10 = arith.index_cast %4 : i32 to index
    %c0_2 = arith.constant 0 : index
    %c0_3 = arith.constant 0 : index
    %11 = vector.load %arg9[%10, %c0_2, %c0_3] : memref<8x1x32xf32, #tpu.memory_space<vmem>>, vector<1x1x32xf32>
    %12 = vector.shape_cast %11 : vector<1x1x32xf32> to vector<1x32xf32>
    %13 = arith.index_cast %6 : i32 to index
    %c0_4 = arith.constant 0 : index
    %c0_5 = arith.constant 0 : index
    %14 = vector.load %arg8[%13, %c0_4, %c0_5] : memref<8x1x32xf32, #tpu.memory_space<vmem>>, vector<1x1x32xf32>
    %15 = vector.shape_cast %14 : vector<1x1x32xf32> to vector<1x32xf32>
    %c0_6 = arith.constant 0 : index
    %c0_7 = arith.constant 0 : index
    %16 = vector.load %arg4[%c0_6, %c0_7] : memref<32x128xf32, #tpu.memory_space<vmem>>, vector<32x128xf32>
    %cst = arith.constant dense<0.000000e+00> : vector<1x128xf32>
    %17 = tpu.matmul %15, %16, %cst {dimension_numbers = #tpu.dot_dimension_numbers<[1], [0], [0], [1], [0, 0, 1, 1], [], []>} : vector<1x32xf32>, vector<32x128xf32>, vector<1x128xf32> -> vector<1x128xf32>
    %c0_8 = arith.constant 0 : index
    %c0_9 = arith.constant 0 : index
    %18 = vector.load %arg5[%c0_8, %c0_9] : memref<32x128xf32, #tpu.memory_space<vmem>>, vector<32x128xf32>
    %cst_10 = arith.constant dense<0.000000e+00> : vector<1x128xf32>
    %19 = tpu.matmul %9, %18, %cst_10 {dimension_numbers = #tpu.dot_dimension_numbers<[1], [0], [0], [1], [0, 0, 1, 1], [], []>} : vector<1x32xf32>, vector<32x128xf32>, vector<1x128xf32> -> vector<1x128xf32>
    %20 = arith.addf %17, %19 : vector<1x128xf32>
    %c0_11 = arith.constant 0 : index
    %c0_12 = arith.constant 0 : index
    %c0_13 = arith.constant 0 : index
    %21 = vector.load %arg3[%c0_11, %c0_12, %c0_13] : memref<1x1x128xf32, #tpu.memory_space<vmem>>, vector<1x1x128xf32>
    %22 = vector.shape_cast %21 : vector<1x1x128xf32> to vector<1x128xf32>
    %23 = arith.addf %20, %22 : vector<1x128xf32>
    %24 = vector.extract_strided_slice %23 {offsets = [0, 0], sizes = [1, 96], strides = [1, 1]} : vector<1x128xf32> to vector<1x96xf32>
    %25 = arith.negf %24 : vector<1x96xf32>
    %26 = math.exp %25 : vector<1x96xf32>
    %cst_14 = arith.constant 1.000000e+00 : f32
    %27 = vector.broadcast %cst_14 : f32 to vector<1x96xf32>
    %28 = arith.addf %27, %26 : vector<1x96xf32>
    %29 = arith.divf %27, %28 : vector<1x96xf32>
    %30 = vector.extract_strided_slice %23 {offsets = [0, 96], sizes = [1, 32], strides = [1, 1]} : vector<1x128xf32> to vector<1x32xf32>
    %31 = math.tanh %30 : vector<1x32xf32>
    %32 = vector.extract_strided_slice %29 {offsets = [0, 0], sizes = [1, 32], strides = [1, 1]} : vector<1x96xf32> to vector<1x32xf32>
    %33 = vector.extract_strided_slice %29 {offsets = [0, 32], sizes = [1, 32], strides = [1, 1]} : vector<1x96xf32> to vector<1x32xf32>
    %34 = vector.extract_strided_slice %29 {offsets = [0, 64], sizes = [1, 32], strides = [1, 1]} : vector<1x96xf32> to vector<1x32xf32>
    %35 = arith.mulf %32, %31 : vector<1x32xf32>
    %36 = arith.mulf %34, %12 : vector<1x32xf32>
    %37 = arith.addf %35, %36 : vector<1x32xf32>
    %38 = math.tanh %37 : vector<1x32xf32>
    %39 = arith.mulf %33, %38 : vector<1x32xf32>
    %c2_i32 = arith.constant 2 : i32
    %40 = arith.addi %arg0, %c2_i32 : i32
    %41 = arith.index_cast %40 : i32 to index
    %c0_15 = arith.constant 0 : index
    %c0_16 = arith.constant 0 : index
    %42 = vector.load %arg8[%41, %c0_15, %c0_16] : memref<8x1x32xf32, #tpu.memory_space<vmem>>, vector<1x1x32xf32>
    %43 = vector.shape_cast %42 : vector<1x1x32xf32> to vector<1x32xf32>
    %44 = vector.shape_cast %39 : vector<1x32xf32> to vector<1x1x32xf32>
    tpu.vector_store %arg8[%41, %c0_15, %c0_16], %44 {strides = array<i32>} : memref<8x1x32xf32, #tpu.memory_space<vmem>>, vector<1x1x32xf32>,
    %c2_i32_17 = arith.constant 2 : i32
    %45 = arith.addi %arg0, %c2_i32_17 : i32
    %46 = arith.index_cast %45 : i32 to index
    %c0_18 = arith.constant 0 : index
    %c0_19 = arith.constant 0 : index
    %47 = vector.load %arg9[%46, %c0_18, %c0_19] : memref<8x1x32xf32, #tpu.memory_space<vmem>>, vector<1x1x32xf32>
    %48 = vector.shape_cast %47 : vector<1x1x32xf32> to vector<1x32xf32>
    %49 = vector.shape_cast %37 : vector<1x32xf32> to vector<1x1x32xf32>
    tpu.vector_store %arg9[%46, %c0_18, %c0_19], %49 {strides = array<i32>} : memref<8x1x32xf32, #tpu.memory_space<vmem>>, vector<1x1x32xf32>,
    return
  }
  func.func @transform_0(%arg0: i32, %arg1: memref<6xi32, #tpu.memory_space<smem>>, %arg2: memref<6xi32, #tpu.memory_space<smem>>) -> (i32, i32, i32) {
    %c0_i32 = arith.constant 0 : i32
    %c0_i32_0 = arith.constant 0 : i32
    %c0_i32_1 = arith.constant 0 : i32
    return %arg0, %c0_i32, %c0_i32_0 : i32, i32, i32
  }
  func.func @transform_1(%arg0: i32, %arg1: memref<6xi32, #tpu.memory_space<smem>>, %arg2: memref<6xi32, #tpu.memory_space<smem>>) -> (i32, i32) {
    %c0_i32 = arith.constant 0 : i32
    %c0_i32_0 = arith.constant 0 : i32
    %c0_i32_1 = arith.constant 0 : i32
    return %c0_i32, %c0_i32_0 : i32, i32
  }
  func.func @transform_2(%arg0: i32, %arg1: memref<6xi32, #tpu.memory_space<smem>>, %arg2: memref<6xi32, #tpu.memory_space<smem>>) -> (i32, i32) {
    %c0_i32 = arith.constant 0 : i32
    %c0_i32_0 = arith.constant 0 : i32
    %c0_i32_1 = arith.constant 0 : i32
    return %c0_i32, %c0_i32_0 : i32, i32
  }
  func.func @transform_3(%arg0: i32, %arg1: memref<6xi32, #tpu.memory_space<smem>>, %arg2: memref<6xi32, #tpu.memory_space<smem>>) -> (i32, i32) {
    %c0_i32 = arith.constant 0 : i32
    %c0_i32_0 = arith.constant 0 : i32
    %c0_i32_1 = arith.constant 0 : i32
    return %c0_i32, %c0_i32_0 : i32, i32
  }
  func.func @transform_4(%arg0: i32, %arg1: memref<6xi32, #tpu.memory_space<smem>>, %arg2: memref<6xi32, #tpu.memory_space<smem>>) -> (i32, i32) {
    %c0_i32 = arith.constant 0 : i32
    %c0_i32_0 = arith.constant 0 : i32
    %c0_i32_1 = arith.constant 0 : i32
    return %c0_i32, %c0_i32_0 : i32, i32
  }
  func.func @transform_5(%arg0: i32, %arg1: memref<6xi32, #tpu.memory_space<smem>>, %arg2: memref<6xi32, #tpu.memory_space<smem>>) -> (i32, i32, i32) {
    %c0_i32 = arith.constant 0 : i32
    %c0_i32_0 = arith.constant 0 : i32
    %c0_i32_1 = arith.constant 0 : i32
    %c0_i32_2 = arith.constant 0 : i32
    return %c0_i32, %c0_i32_0, %c0_i32_1 : i32, i32, i32
  }
  func.func @transform_6(%arg0: i32, %arg1: memref<6xi32, #tpu.memory_space<smem>>, %arg2: memref<6xi32, #tpu.memory_space<smem>>) -> (i32, i32, i32) {
    %c0_i32 = arith.constant 0 : i32
    %c0_i32_0 = arith.constant 0 : i32
    %c0_i32_1 = arith.constant 0 : i32
    %c0_i32_2 = arith.constant 0 : i32
    return %c0_i32, %c0_i32_0, %c0_i32_1 : i32, i32, i32
  }
}

</mosaic_0001>

<llo_original>
// kernel: tree_forward_fused.1
$region0: #{tree_forward_fused.1}
  #allocation0 [shape = 'u32[]', space=smem, size = 0x4, offset = 0x4, fixed_abs, tag = 'smem constant byte address 0x4 - core index']
  #allocation1 [shape = 'u32[144,128]{1,0:T(1,128)}', space=vmem, size = 0x12000, scoped, tag = 'internal scratch']
  #allocation2 [shape = 's32[1]{0}', space=sflag, size = 0x4, scoped, tag = 'scoped memory for tree_forward_fused.1']
  #allocation3 [shape = 'u8[512]{0}', space=smem, size = 0x200, scoped, tag = 'prefetched SMEM operand 0']
  #allocation4 [shape = 'u8[512]{0}', space=smem, size = 0x200, scoped, tag = 'prefetched SMEM operand 1']
  %s0 = inlined_call_operand.vmem [shape: s32[6], index: 0, kind: input, shape index: {}]
  %s1 = inlined_call_operand.vmem [shape: s32[6], index: 1, kind: input, shape index: {}]
  %s2 = inlined_call_operand.vmem [shape: f32[6,1,128], index: 2, kind: input, shape index: {}]
  %s3 = inlined_call_operand.vmem [shape: f32[32,128], index: 3, kind: input, shape index: {}]
  %s4 = inlined_call_operand.vmem [shape: f32[32,128], index: 4, kind: input, shape index: {}]
  %s5 = inlined_call_operand.vmem [shape: f32[1,32], index: 5, kind: input, shape index: {}]
  %s6 = inlined_call_operand.vmem [shape: f32[1,32], index: 6, kind: input, shape index: {}]
  %s7 = inlined_call_operand.hbm [shape: f32[8,1,32], index: 7, kind: output, shape index: {0}]
  %s8 = inlined_call_operand.hbm [shape: f32[8,1,32], index: 8, kind: output, shape index: {1}]
  %9 = xla_tuple %s7, %s8
  %s10 = sld [smem:[#allocation0]]
  $region65: #{tree_forward_fused.1} parent=0
    _
  %s12 = ssub.s32 1, %s10
  %s13 = scalar_select 0, %s12, %s10
  %s14 = sshll.u32 %s0, 4
  %s15 = int_to_ptr.vmem [resolvable:$true] %s14
  %17 = dma.vmem_to_smem %s15, 16, [#allocation3], [#allocation2]
  %s18 = sshll.u32 %s1, 4
  %s19 = int_to_ptr.vmem [resolvable:$true] %s18
  %21 = dma.vmem_to_smem %s19, 16, [#allocation4], [#allocation2]
  %22 = dma.done [#allocation2], 32
  %23 = sfence
  $region1: #{tree_forward_fused.1} parent=0
    #allocation5 [shape = 'u8[4096]{0}', space=vmem, size = 0x1000, scoped, tag = 'output window, operand 0, single buffered']
    #allocation6 [shape = 's32[2]{0}', space=sflag, size = 0x8, scoped, tag = 'scoped memory for tree_forward_fused.1']
    #allocation7 [shape = 'u8[4096]{0}', space=vmem, size = 0x1000, scoped, tag = 'output window, operand 1, single buffered']
    #allocation8 [shape = 's32[1]{0}', space=sflag, size = 0x4, scoped, tag = 'scoped memory for tree_forward_fused.1']
    %24 = vsyncpa [#allocation6], 0
    %25 = vsyncpa [#allocation8], 0
    loop: start=0, step=1, limit=8
    $region2: #{tree_forward_fused.1} parent=1 // loop_pre_header
      _
    $region3: #{tree_forward_fused.1} parent=1 // loop_header
      %s27 = sphi 0, %s31
      %p28 = scmp.ge.s32.totalorder %s27, 8
      %s37 = sphi 0, %s39
      %s40 = sphi 0, %s37
      %s41 = sphi 0, %s40
      %s57 = sphi 0, %s41
      %s61 = sphi 0, %s61
      %s63 = sphi 0, %s61
      %s64 = sphi 0, %s63
      %s78 = sphi 0, %s64
      %s82 = sphi 0, %s82
      %s84 = sphi 0, %s82
      %s85 = sphi 0, %s84
      %s99 = sphi 0, %s85
      %s103 = sphi 0, %s103
      %s105 = sphi 0, %s103
      %s106 = sphi 0, %s105
      %s120 = sphi 0, %s106
      %s124 = sphi 0, %s124
      %s126 = sphi 0, %s124
      %s127 = sphi 0, %s126
      %s141 = sphi 0, %s127
      %s145 = sphi 0, %s145
      %s147 = sphi 0, %s145
      %s148 = sphi 0, %s147
      %s162 = sphi 0, %s148
      %s166 = sphi 0, %s166
      %s168 = sphi 0, %s166
      %s169 = sphi 0, %s168
      %s183 = sphi 0, %s169
    $region4: #{tree_forward_fused.1} parent=1 // loop_header_branch
      %30 = sbr.rel (%p28) target = $region8
    $region5: #{tree_forward_fused.1} parent=1 // loop_body
      %s32 = ssub.s32 %s27, 1
      %s33 = ssub.s32 %s27, 2
      %s34 = sadd.s32 %s27, 1
      %s35 = ssub.s32 %s27, %s34
      %p36 = scmp.eq.s32.totalorder %s35, 0
      %s38 = sadd.s32 %s37, 1
      %s39 = scalar_select %p36, %s37, %s38
      %p42 = pneg %p36
      %p43 = scmp.eq.s32.totalorder %s27, 5
      %p44 = por %p42, %p43
      %p45 = scmp.ne.s32.totalorder %s37, %s40
      %p46 = scmp.eq.s32.totalorder %s27, 0
      %p47 = por %p45, %p46
      %p48 = scmp.ne.s32.totalorder %s37, %s40
      %p49 = scmp.eq.s32.totalorder %s32, 5
      %p50 = por %p48, %p49
      %p51 = scmp.ne.s32.totalorder %s40, %s41
      %p52 = scmp.eq.s32.totalorder %s32, 0
      %p53 = por %p51, %p52
      %p54 = scmp.ne.s32.totalorder %s40, %s41
      %p55 = scmp.eq.s32.totalorder %s33, 5
      %p56 = por %p54, %p55
      %p58 = scmp.ne.s32.totalorder %s41, %s57
      %p59 = scmp.eq.s32.totalorder %s33, 0
      %p60 = por %p58, %p59
      %s62 = sadd.s32 %s61, 1
      %p65 = scmp.eq.s32.totalorder %s27, 5
      %p66 = scmp.ne.s32.totalorder %s61, %s63
      %p67 = scmp.eq.s32.totalorder %s27, 0
      %p68 = por %p66, %p67
      %p69 = scmp.ne.s32.totalorder %s61, %s63
      %p70 = scmp.eq.s32.totalorder %s32, 5
      %p71 = por %p69, %p70
      %p72 = scmp.ne.s32.totalorder %s63, %s64
      %p73 = scmp.eq.s32.totalorder %s32, 0
      %p74 = por %p72, %p73
      %p75 = scmp.ne.s32.totalorder %s63, %s64
      %p76 = scmp.eq.s32.totalorder %s33, 5
      %p77 = por %p75, %p76
      %p79 = scmp.ne.s32.totalorder %s64, %s78
      %p80 = scmp.eq.s32.totalorder %s33, 0
      %p81 = por %p79, %p80
      %s83 = sadd.s32 %s82, 1
      %p86 = scmp.eq.s32.totalorder %s27, 5
      %p87 = scmp.ne.s32.totalorder %s82, %s84
      %p88 = scmp.eq.s32.totalorder %s27, 0
      %p89 = por %p87, %p88
      %p90 = scmp.ne.s32.totalorder %s82, %s84
      %p91 = scmp.eq.s32.totalorder %s32, 5
      %p92 = por %p90, %p91
      %p93 = scmp.ne.s32.totalorder %s84, %s85
      %p94 = scmp.eq.s32.totalorder %s32, 0
      %p95 = por %p93, %p94
      %p96 = scmp.ne.s32.totalorder %s84, %s85
      %p97 = scmp.eq.s32.totalorder %s33, 5
      %p98 = por %p96, %p97
      %p100 = scmp.ne.s32.totalorder %s85, %s99
      %p101 = scmp.eq.s32.totalorder %s33, 0
      %p102 = por %p100, %p101
      %s104 = sadd.s32 %s103, 1
      %p107 = scmp.eq.s32.totalorder %s27, 5
      %p108 = scmp.ne.s32.totalorder %s103, %s105
      %p109 = scmp.eq.s32.totalorder %s27, 0
      %p110 = por %p108, %p109
      %p111 = scmp.ne.s32.totalorder %s103, %s105
      %p112 = scmp.eq.s32.totalorder %s32, 5
      %p113 = por %p111, %p112
      %p114 = scmp.ne.s32.totalorder %s105, %s106
      %p115 = scmp.eq.s32.totalorder %s32, 0
      %p116 = por %p114, %p115
      %p117 = scmp.ne.s32.totalorder %s105, %s106
      %p118 = scmp.eq.s32.totalorder %s33, 5
      %p119 = por %p117, %p118
      %p121 = scmp.ne.s32.totalorder %s106, %s120
      %p122 = scmp.eq.s32.totalorder %s33, 0
      %p123 = por %p121, %p122
      %s125 = sadd.s32 %s124, 1
      %p128 = scmp.eq.s32.totalorder %s27, 5
      %p129 = scmp.ne.s32.totalorder %s124, %s126
      %p130 = scmp.eq.s32.totalorder %s27, 0
      %p131 = por %p129, %p130
      %p132 = scmp.ne.s32.totalorder %s124, %s126
      %p133 = scmp.eq.s32.totalorder %s32, 5
      %p134 = por %p132, %p133
      %p135 = scmp.ne.s32.totalorder %s126, %s127
      %p136 = scmp.eq.s32.totalorder %s32, 0
      %p137 = por %p135, %p136
      %p138 = scmp.ne.s32.totalorder %s126, %s127
      %p139 = scmp.eq.s32.totalorder %s33, 5
      %p140 = por %p138, %p139
      %p142 = scmp.ne.s32.totalorder %s127, %s141
      %p143 = scmp.eq.s32.totalorder %s33, 0
      %p144 = por %p142, %p143
      %s146 = sadd.s32 %s145, 1
      %p149 = scmp.eq.s32.totalorder %s27, 5
      %p150 = scmp.ne.s32.totalorder %s145, %s147
      %p151 = scmp.eq.s32.totalorder %s27, 0
      %p152 = por %p150, %p151
      %p153 = scmp.ne.s32.totalorder %s145, %s147
      %p154 = scmp.eq.s32.totalorder %s32, 5
      %p155 = por %p153, %p154
      %p156 = scmp.ne.s32.totalorder %s147, %s148
      %p157 = scmp.eq.s32.totalorder %s32, 0
      %p158 = por %p156, %p157
      %p159 = scmp.ne.s32.totalorder %s147, %s148
      %p160 = scmp.eq.s32.totalorder %s33, 5
      %p161 = por %p159, %p160
      %p163 = scmp.ne.s32.totalorder %s148, %s162
      %p164 = scmp.eq.s32.totalorder %s33, 0
      %p165 = por %p163, %p164
      %s167 = sadd.s32 %s166, 1
      %p170 = scmp.eq.s32.totalorder %s27, 5
      %p171 = scmp.ne.s32.totalorder %s166, %s168
      %p172 = scmp.eq.s32.totalorder %s27, 0
      %p173 = por %p171, %p172
      %p174 = scmp.ne.s32.totalorder %s166, %s168
      %p175 = scmp.eq.s32.totalorder %s32, 5
      %p176 = por %p174, %p175
      %p177 = scmp.ne.s32.totalorder %s168, %s169
      %p178 = scmp.eq.s32.totalorder %s32, 0
      %p179 = por %p177, %p178
      %p180 = scmp.ne.s32.totalorder %s168, %s169
      %p181 = scmp.eq.s32.totalorder %s33, 5
      %p182 = por %p180, %p181
      %p184 = scmp.ne.s32.totalorder %s169, %s183
      %p185 = scmp.eq.s32.totalorder %s33, 0
      %p186 = por %p184, %p185
      %p187 = scmp.le.s32.totalorder 1, %s27
      %p188 = scmp.lt.s32.totalorder %s27, 7
      %p189 = pnand %p187, %p188
      %p190 = pneg %p189
      // Predicated region
      $region9: #{tree_forward_fused.1} parent=5 // pred_check
        _
      $region10: #{tree_forward_fused.1} parent=5 // pred_check_branch
        %192 = sbr.rel (%p189) target = $region12
      $region11: #{tree_forward_fused.1} parent=5 // pred_region
        %s193 = ssub.s32 %s27, 1
        // Predicated region
        $region13: #{tree_forward_fused.1} parent=11 // pred_check
          %p194 = pneg %p74
        $region14: #{tree_forward_fused.1} parent=11 // pred_check_branch
          %196 = sbr.rel (%p194) target = $region16
        $region15: #{tree_forward_fused.1} parent=11 // pred_region
          _
        $region16: #{tree_forward_fused.1} parent=11 // pred_fallthru
          _
        // Predicated region
        $region17: #{tree_forward_fused.1} parent=11 // pred_check
          %p197 = pneg %p95
        $region18: #{tree_forward_fused.1} parent=11 // pred_check_branch
          %199 = sbr.rel (%p197) target = $region20
        $region19: #{tree_forward_fused.1} parent=11 // pred_region
          _
        $region20: #{tree_forward_fused.1} parent=11 // pred_fallthru
          _
        // Predicated region
        $region21: #{tree_forward_fused.1} parent=11 // pred_check
          %p200 = pneg %p116
        $region22: #{tree_forward_fused.1} parent=11 // pred_check_branch
          %202 = sbr.rel (%p200) target = $region24
        $region23: #{tree_forward_fused.1} parent=11 // pred_region
          _
        $region24: #{tree_forward_fused.1} parent=11 // pred_fallthru
          _
        // Predicated region
        $region25: #{tree_forward_fused.1} parent=11 // pred_check
          %p203 = pneg %p137
        $region26: #{tree_forward_fused.1} parent=11 // pred_check_branch
          %205 = sbr.rel (%p203) target = $region28
        $region27: #{tree_forward_fused.1} parent=11 // pred_region
          _
        $region28: #{tree_forward_fused.1} parent=11 // pred_fallthru
          _
      $region12: #{tree_forward_fused.1} parent=5 // pred_fallthru
        _
      %p206 = scmp.lt.s32.totalorder %s27, 6
      // Predicated region
      $region29: #{tree_forward_fused.1} parent=5 // pred_check
        %p207 = pneg %p206
      $region30: #{tree_forward_fused.1} parent=5 // pred_check_branch
        %209 = sbr.rel (%p207) target = $region32
      $region31: #{tree_forward_fused.1} parent=5 // pred_region
        // Predicated region
        $region33: #{tree_forward_fused.1} parent=31 // pred_check
          %p210 = pneg %p47
        $region34: #{tree_forward_fused.1} parent=31 // pred_check_branch
          %212 = sbr.rel (%p210) target = $region36
        $region35: #{tree_forward_fused.1} parent=31 // pred_region
          %p213 = scmp.lt.s32.totalorder %s27, 5
          %s214 = scalar_select %p213, %s27, 5
          %s215 = scalar_lea.vmem %s2, %s214
        $region36: #{tree_forward_fused.1} parent=31 // pred_fallthru
          _
      $region32: #{tree_forward_fused.1} parent=5 // pred_fallthru
        _
      %p216 = scmp.le.s32.totalorder 1, %s27
      %p217 = scmp.lt.s32.totalorder %s27, 7
      %p218 = pnand %p216, %p217
      %p219 = pneg %p218
      // Predicated region
      $region37: #{tree_forward_fused.1} parent=5 // pred_check
        _
      $region38: #{tree_forward_fused.1} parent=5 // pred_check_branch
        %221 = sbr.rel (%p218) target = $region40
      $region39: #{tree_forward_fused.1} parent=5 // pred_region
        %s222 = ssub.s32 %s27, 1
        %p223 = scmp.lt.s32.totalorder %s32, 5
        %s224 = scalar_select %p223, %s32, 5
        %s225 = scalar_lea.vmem %s2, %s224
        %p226 = pneg %p53
        %p227 = pneg %p50
        %p228 = pneg %p74
        %p229 = pneg %p71
        %p230 = pneg %p95
        %p231 = pneg %p92
        %p232 = pneg %p116
        %p233 = pneg %p113
        %p234 = pneg %p137
        %p235 = pneg %p134
        %p236 = pneg %p158
        %p237 = pneg %p155
        %p238 = pneg %p179
        %p239 = pneg %p176
        %p240 = scmp.lt.s32.totalorder %s32, 5
        %s241 = scalar_select %p240, %s32, 5
        %s242 = scalar_lea.vmem %s2, %s241
        %p243 = scmp.eq.s32.totalorder %s32, 0
        // Predicated region
        $region41: #{tree_forward_fused.1} parent=39 // pred_check
          %p244 = pneg %p243
        $region42: #{tree_forward_fused.1} parent=39 // pred_check_branch
          %246 = sbr.rel (%p244) target = $region44
        $region43: #{tree_forward_fused.1} parent=39 // pred_region
          %vm247 = vcmask 253952
          %248 = vst.msk [vmem:[#allocation5] sm:$0x1] %vm247, 0.0
          %249 = vst.msk [vmem:[#allocation7] sm:$0x1] %vm247, 0.0
          %v250 = vld [vmem:[%s5] sm:$0x1]
          %s251 = scalar_lea.vmem [#allocation5], 1
          %252 = vst.msk [vmem:[%s251] sm:$0x1] %vm247, %v250
          %v253 = vld [vmem:[%s6] sm:$0x1]
          %s254 = scalar_lea.vmem [#allocation7], 1
          %255 = vst.msk [vmem:[%s254] sm:$0x1] %vm247, %v253
        $region44: #{tree_forward_fused.1} parent=39 // pred_fallthru
          _
        %s256 = sld [smem:[#allocation3 + %s32]]
        %s257 = sld [smem:[#allocation4 + %s32]]
        %s258 = scalar_lea.vmem [#allocation5], %s256
        %v259 = vld [vmem:[%s258] sm:$0x1]
        %s260 = scalar_lea.vmem [#allocation7], %s256
        %v261 = vld [vmem:[%s260] sm:$0x1]
        %s262 = scalar_lea.vmem [#allocation5], %s257
        %v263 = vld [vmem:[%s262] sm:$0x1]
        %v264 = vld [vmem:[%s3] sm:$0xff]
        %v265 = vld [vmem:[%s3 + $0x8] sm:$0xff]
        %v266 = vld [vmem:[%s3 + $0x10] sm:$0xff]
        %v267 = vld [vmem:[%s3 + $0x18] sm:$0xff]
        %v268 = vld [vmem:[%s4] sm:$0xff]
        %v269 = vld [vmem:[%s4 + $0x8] sm:$0xff]
        %v270 = vld [vmem:[%s4 + $0x10] sm:$0xff]
        %v271 = vld [vmem:[%s4 + $0x18] sm:$0xff]
        %vm272 = vcmask 261120
        %v274 = vsel %vm272, %v259, 0
        %276 = vmatprep.subr.mxu0 0.0
        %277 = vmatpush1.msra.mxu0 %v268
        %278 = vmatprep.subr.mxu0 0.0
        %279 = vmatpush1.msra.mxu0 %v269
        %280 = vmatprep.subr.mxu0 0.0
        %281 = vmatpush1.msra.mxu0 %v270
        %282 = vmatprep.subr.mxu0 0.0
        %283 = vmatpush1.msra.mxu0 %v271
        %284 = vmatprep.subr.mxu0 0.0
        %285 = vmatpush1.msra.mxu0 0.0
        %286 = vmatprep.subr.mxu0 0.0
        %287 = vmatpush1.msra.mxu0 0.0
        %288 = vmatprep.subr.mxu0 0.0
        %289 = vmatpush1.msra.mxu0 0.0
        %290 = vmatprep.subr.mxu0 0.0
        %291 = vmatpush1.msra.mxu0 0.0
        %292 = vmatprep.subr.mxu0 0.0
        %293 = vmatpush1.msra.mxu0 0.0
        %294 = vmatprep.subr.mxu0 0.0
        %295 = vmatpush1.msra.mxu0 0.0
        %296 = vmatprep.subr.mxu0 0.0
        %297 = vmatpush1.msra.mxu0 0.0
        %298 = vmatprep.subr.mxu0 0.0
        %299 = vmatpush1.msra.mxu0 0.0
        %300 = vmatprep.subr.mxu0 0.0
        %301 = vmatpush1.msra.mxu0 0.0
        %302 = vmatprep.subr.mxu0 0.0
        %303 = vmatpush1.msra.mxu0 0.0
        %304 = vmatprep.subr.mxu0 0.0
        %305 = vmatpush1.msra.mxu0 0.0
        %306 = vmatprep.subr.mxu0 0.0
        %307 = vmatpush1.msra.mxu0 0.0
        %308 = vmatprep.subr.mxu0 0.0
        %309 = vmatpush1.msra.mxu0 0.0
        %310 = vmatprep.subr.mxu0 0.0
        %311 = vmatpush1.msra.mxu0 0.0
        %312 = vmatprep.subr.mxu0 0.0
        %313 = vmatpush1.msra.mxu0 0.0
        %314 = vmatprep.subr.mxu0 0.0
        %315 = vmatpush1.msra.mxu0 0.0
        %316 = vmatprep.subr.mxu0 0.0
        %317 = vmatpush1.msra.mxu0 0.0
        %318 = vmatprep.subr.mxu0 0.0
        %319 = vmatpush1.msra.mxu0 0.0
        %320 = vmatprep.subr.mxu0 0.0
        %321 = vmatpush1.msra.mxu0 0.0
        %322 = vmatprep.subr.mxu0 0.0
        %323 = vmatpush1.msra.mxu0 0.0
        %324 = vmatprep.subr.mxu0 0.0
        %325 = vmatpush1.msra.mxu0 0.0
        %326 = vmatprep.subr.mxu0 0.0
        %327 = vmatpush1.msra.mxu0 0.0
        %328 = vmatprep.subr.mxu0 0.0
        %329 = vmatpush1.msra.mxu0 0.0
        %330 = vmatprep.subr.mxu0 0.0
        %331 = vmatpush1.msra.mxu0 0.0
        %332 = vmatprep.subr.mxu0 0.0
        %333 = vmatpush1.msra.mxu0 0.0
        %334 = vmatprep.subr.mxu0 0.0
        %335 = vmatpush1.msra.mxu0 0.0
        %336 = vmatprep.subr.mxu0 0.0
        %337 = vmatpush1.msra.mxu0 0.0
        %338 = vmatprep.subr.mxu0 0.0
        %339 = vmatpush1.msra.mxu0 0.0
        %340 = vmatprep.mubr.f32.mxu0 0.0
        %341 = vmatmul.mubr.f32.gmra.mrb[0].mxu0 %v274
        %v342 = vpop.f32.mrb[0].mxu0
        %v343 = vadd.f32 0.0, %v342
        %v344 = vpop.f32.mrb[0].mxu0
        %345 = vdwg.mxu0
        %v347 = vsel %vm272, %v263, 0
        %349 = vmatprep.subr.mxu0 0.0
        %350 = vmatpush1.msra.mxu0 %v264
        %351 = vmatprep.subr.mxu0 0.0
        %352 = vmatpush1.msra.mxu0 %v265
        %353 = vmatprep.subr.mxu0 0.0
        %354 = vmatpush1.msra.mxu0 %v266
        %355 = vmatprep.subr.mxu0 0.0
        %356 = vmatpush1.msra.mxu0 %v267
        %357 = vmatprep.subr.mxu0 0.0
        %358 = vmatpush1.msra.mxu0 0.0
        %359 = vmatprep.subr.mxu0 0.0
        %360 = vmatpush1.msra.mxu0 0.0
        %361 = vmatprep.subr.mxu0 0.0
        %362 = vmatpush1.msra.mxu0 0.0
        %363 = vmatprep.subr.mxu0 0.0
        %364 = vmatpush1.msra.mxu0 0.0
        %365 = vmatprep.subr.mxu0 0.0
        %366 = vmatpush1.msra.mxu0 0.0
        %367 = vmatprep.subr.mxu0 0.0
        %368 = vmatpush1.msra.mxu0 0.0
        %369 = vmatprep.subr.mxu0 0.0
        %370 = vmatpush1.msra.mxu0 0.0
        %371 = vmatprep.subr.mxu0 0.0
        %372 = vmatpush1.msra.mxu0 0.0
        %373 = vmatprep.subr.mxu0 0.0
        %374 = vmatpush1.msra.mxu0 0.0
        %375 = vmatprep.subr.mxu0 0.0
        %376 = vmatpush1.msra.mxu0 0.0
        %377 = vmatprep.subr.mxu0 0.0
        %378 = vmatpush1.msra.mxu0 0.0
        %379 = vmatprep.subr.mxu0 0.0
        %380 = vmatpush1.msra.mxu0 0.0
        %381 = vmatprep.subr.mxu0 0.0
        %382 = vmatpush1.msra.mxu0 0.0
        %383 = vmatprep.subr.mxu0 0.0
        %384 = vmatpush1.msra.mxu0 0.0
        %385 = vmatprep.subr.mxu0 0.0
        %386 = vmatpush1.msra.mxu0 0.0
        %387 = vmatprep.subr.mxu0 0.0
        %388 = vmatpush1.msra.mxu0 0.0
        %389 = vmatprep.subr.mxu0 0.0
        %390 = vmatpush1.msra.mxu0 0.0
        %391 = vmatprep.subr.mxu0 0.0
        %392 = vmatpush1.msra.mxu0 0.0
        %393 = vmatprep.subr.mxu0 0.0
        %394 = vmatpush1.msra.mxu0 0.0
        %395 = vmatprep.subr.mxu0 0.0
        %396 = vmatpush1.msra.mxu0 0.0
        %397 = vmatprep.subr.mxu0 0.0
        %398 = vmatpush1.msra.mxu0 0.0
        %399 = vmatprep.subr.mxu0 0.0
        %400 = vmatpush1.msra.mxu0 0.0
        %401 = vmatprep.subr.mxu0 0.0
        %402 = vmatpush1.msra.mxu0 0.0
        %403 = vmatprep.subr.mxu0 0.0
        %404 = vmatpush1.msra.mxu0 0.0
        %405 = vmatprep.subr.mxu0 0.0
        %406 = vmatpush1.msra.mxu0 0.0
        %407 = vmatprep.subr.mxu0 0.0
        %408 = vmatpush1.msra.mxu0 0.0
        %409 = vmatprep.subr.mxu0 0.0
        %410 = vmatpush1.msra.mxu0 0.0
        %411 = vmatprep.subr.mxu0 0.0
        %412 = vmatpush1.msra.mxu0 0.0
        %413 = vmatprep.mubr.f32.mxu0 0.0
        %414 = vmatmul.mubr.f32.gmra.mrb[0].mxu0 %v347
        %v415 = vpop.f32.mrb[0].mxu0
        %v416 = vadd.f32 %v343, %v415
        %v417 = vpop.f32.mrb[0].mxu0
        %418 = vdwg.mxu0
        %v419 = vld [vmem:[%s242] sm:$0x1]
        %v420 = vadd.f32 %v416, %v419
        %v421 = vxor.u32 %v420, 2147483648
        %v422 = vmul.f32 %v421, 1.442695
        %v423 = vpow.pop %v422
        %v424 = vadd.f32 %v423, 1.0
        %v425 = vrcp.pop %v424
        %v426 = vmul.f32 1.0, %v425
        %v427 = vtanh.pop %v420
        %429 = vrot.lane.b32.xlu0 %v427, 32
        %v430 = vpop.permute.xlu0 %429
        %v432 = vmul.f32 %v426, %v430
        %v434 = vlaneseq
        %v435 = vshrl.u32 %v434, 7
        %v436 = vsub.s32 0, %v435
        %v437 = vrot.slane %v261, %v436
        %438 = vrot.lane.b32.xlu0 %v437, 64
        %v439 = vpop.permute.xlu0 %438
        %v441 = vmul.f32 %v426, %v439
        %443 = vrot.lane.b32.xlu0 %v441, 64
        %v444 = vpop.permute.xlu0 %443
        %v446 = vadd.f32 %v432, %v444
        %v447 = vtanh.pop %v446
        %449 = vrot.lane.b32.xlu0 %v447, 32
        %v450 = vpop.permute.xlu0 %449
        %v452 = vmul.f32 %v426, %v450
        %s453 = sadd.s32 %s32, 2
        %455 = vrot.lane.b32.xlu0 %v452, 96
        %v456 = vpop.permute.xlu0 %455
        %s458 = scalar_lea.vmem [#allocation5], %s453
        %vm459 = vcmask 253952
        %460 = vst.msk [vmem:[%s458] sm:$0x1] %vm459, %v456
        %s461 = scalar_lea.vmem [#allocation7], %s453
        %462 = vst.msk [vmem:[%s461] sm:$0x1] %vm459, %v446
        // Predicated region
        $region45: #{tree_forward_fused.1} parent=39 // pred_check
          %p463 = pneg %p155
        $region46: #{tree_forward_fused.1} parent=39 // pred_check_branch
          %465 = sbr.rel (%p463) target = $region48
        $region47: #{tree_forward_fused.1} parent=39 // pred_region
          %s467 = ssub.s32 128, 128
          %468 = vsyncadd [#allocation6], %s467
          %s469 = sshll.u32 [#allocation5], 4
          %s470 = int_to_ptr.vmem [resolvable:$true] %s469
          %475 = dma.vmem_to_hbm [thread:$0]  %s470, 128, %s7, [#allocation6], 16, 16, 1
        $region48: #{tree_forward_fused.1} parent=39 // pred_fallthru
          _
        // Predicated region
        $region49: #{tree_forward_fused.1} parent=39 // pred_check
          %p476 = pneg %p176
        $region50: #{tree_forward_fused.1} parent=39 // pred_check_branch
          %478 = sbr.rel (%p476) target = $region52
        $region51: #{tree_forward_fused.1} parent=39 // pred_region
          %s480 = ssub.s32 128, 128
          %481 = vsyncadd [#allocation8], %s480
          %s482 = sshll.u32 [#allocation7], 4
          %s483 = int_to_ptr.vmem [resolvable:$true] %s482
          %488 = dma.vmem_to_hbm [thread:$0]  %s483, 128, %s8, [#allocation8], 16, 16, 1
        $region52: #{tree_forward_fused.1} parent=39 // pred_fallthru
          _
        // Predicated region
        $region53: #{tree_forward_fused.1} parent=39 // pred_check
          %p489 = pneg %p155
        $region54: #{tree_forward_fused.1} parent=39 // pred_check_branch
          %491 = sbr.rel (%p489) target = $region56
        $region55: #{tree_forward_fused.1} parent=39 // pred_region
          %492 = dma.done [#allocation6], 128
        $region56: #{tree_forward_fused.1} parent=39 // pred_fallthru
          _
        // Predicated region
        $region57: #{tree_forward_fused.1} parent=39 // pred_check
          %p493 = pneg %p176
        $region58: #{tree_forward_fused.1} parent=39 // pred_check_branch
          %495 = sbr.rel (%p493) target = $region60
        $region59: #{tree_forward_fused.1} parent=39 // pred_region
          %496 = dma.done [#allocation8], 128
        $region60: #{tree_forward_fused.1} parent=39 // pred_fallthru
          _
      $region40: #{tree_forward_fused.1} parent=5 // pred_fallthru
        _
      %p497 = scmp.le.s32.totalorder 2, %s27
      // Predicated region
      $region61: #{tree_forward_fused.1} parent=5 // pred_check
        %p498 = pneg %p497
      $region62: #{tree_forward_fused.1} parent=5 // pred_check_branch
        %500 = sbr.rel (%p498) target = $region64
      $region63: #{tree_forward_fused.1} parent=5 // pred_region
        %s501 = ssub.s32 %s27, 2
      $region64: #{tree_forward_fused.1} parent=5 // pred_fallthru
        _
    $region6: #{tree_forward_fused.1} parent=1 // loop_footer
      %s31 = sadd.s32 1, %s27
    $region7: #{tree_forward_fused.1} parent=1 // loop_footer_branch
      %26 = sbr.rel target = $region3
    $region8: #{tree_forward_fused.1} parent=1 // loop_exit
      _
    %502 = vsyncpa [#allocation6], 1
    %s503 = scalar_lea.sflag [#allocation6], 1
    %504 = vsyncpa %s503, 1
    %505 = vsyncpa [#allocation8], 1

</llo_original>
